<compile_context>
chip_gen: v7x
topology: tpu7x:2x2x1
jax: 0.10.0
libtpu: 0.0.40
codegen_flags: <defaults>
</compile_context>

<pallas_src>
import math

import jax
import jax.numpy as jnp
import numpy as np
from jax.experimental import pallas as pl
from jax.experimental.pallas import tpu as pltpu


def _round_up(v, m):
    return ((v + m - 1) // m) * m


# ----------------------------- Pallas kernel ---------------------------------
def make_weightnet_kernel(layer_dims, row_offsets, compute_dtype):
    """Kernel over one (batch, point-tile) block: x [1, Cin, TILE] -> out [1, Cout, TILE]."""
    num_layers = len(layer_dims)

    def kernel(x_ref, w_ref, b_ref, out_ref):
        # Cast f32 input to the MXU dtype in-kernel (free VPU work under this roofline).
        a = x_ref[0].astype(compute_dtype)                  # [Cin, TILE]
        for li, (c_in, c_out) in enumerate(layer_dims):
            off = row_offsets[li]                           # static, 8-aligned
            w = w_ref[off:off + c_out, :c_in]               # [Cout_l, Cin_l]
            b = b_ref[off:off + c_out]                      # [Cout_l, 1] f32
            # 1x1 conv == channel matmul; accumulate in f32.
            y = jnp.dot(w, a, preferred_element_type=jnp.float32) + b
            y = jnp.maximum(y, 0.0)                         # ReLU on the VPU
            a = y if li == num_layers - 1 else y.astype(compute_dtype)
        out_ref[0] = a.astype(out_ref.dtype)

    return kernel


# ------------------------------- JAX wrapper ----------------------------------
def _choose_point_tile(P, max_tile):
    """Prefer the largest multiple-of-128 tile that divides P (no pad, no slice)."""
    max_tile = max(128, (max_tile // 128) * 128)
    best = 0
    t = 128
    while t <= min(P, max_tile):
        if P % t == 0:
            best = t
        t += 128
    if best:
        return best, P
    # Ragged fallback: pad the point axis (tail columns are sliced off after).
    tile = min(max_tile, _round_up(P, 128))
    return tile, _round_up(P, tile)


def weightnet_forward(x, weights, biases, *, max_point_tile=8192,
                      compute_dtype=jnp.bfloat16, out_dtype=jnp.bfloat16):
    """x: [B, Cin, K, N] (NCHW 1x1-conv layout) -> [B, Cout, K, N] in out_dtype."""
    B, Cin, K, N = x.shape
    Cout = int(weights[-1].shape[0])

    P = K * N
    tile, Ppad = _choose_point_tile(P, max_point_tile)

    # No wrapper-side dtype cast: the kernel reads f32 and casts internally.
    xf = x.reshape(B, Cin, P)
    if Ppad != P:
        # TODO(synk): mask the ragged final tile in-kernel instead of pad+slice.
        xf = jnp.pad(xf, ((0, 0), (0, 0), (0, Ppad - P)))

    # Pack all layer weights into one zero-padded, 8-sublane-aligned block and
    # all biases into a matching [R, 1] f32 block (static aligned slices in-kernel).
    layer_dims = [(int(w.shape[1]), int(w.shape[0])) for w in weights]
    cin_max = max(c_in for c_in, _ in layer_dims)
    row_offsets, R = [], 0
    for _, c_out in layer_dims:
        row_offsets.append(R)
        R += _round_up(c_out, 8)
    w_np = np.zeros((R, cin_max), np.float32)
    b_np = np.zeros((R, 1), np.float32)
    for (c_in, c_out), off, w, b in zip(layer_dims, row_offsets, weights, biases):
        w_np[off:off + c_out, :c_in] = np.asarray(w, np.float32)
        b_np[off:off + c_out, 0] = np.asarray(b, np.float32)
    w_packed = jnp.asarray(w_np, compute_dtype)
    b_packed = jnp.asarray(b_np, jnp.float32)

    grid = (B, Ppad // tile)

    in_specs = [
        pl.BlockSpec((1, Cin, tile), lambda b, p: (b, 0, p)),
        pl.BlockSpec(w_packed.shape, lambda b, p: (0, 0)),
        pl.BlockSpec(b_packed.shape, lambda b, p: (0, 0)),
    ]
    out_specs = pl.BlockSpec((1, Cout, tile), lambda b, p: (b, 0, p))

    flops = 2 * B * Ppad * sum(ci * co for ci, co in layer_dims)
    bytes_accessed = (xf.size * xf.dtype.itemsize
                      + B * Cout * Ppad * jnp.dtype(out_dtype).itemsize
                      + w_packed.size * w_packed.dtype.itemsize
                      + b_packed.size * 4)

    out = pl.pallas_call(
        make_weightnet_kernel(layer_dims, row_offsets, compute_dtype),
        out_shape=jax.ShapeDtypeStruct((B, Cout, Ppad), out_dtype),
        grid=grid,
        in_specs=in_specs,
        out_specs=out_specs,
        compiler_params=pltpu.CompilerParams(
            dimension_semantics=("parallel", "parallel")),
        cost_estimate=pl.CostEstimate(
            flops=flops, transcendentals=0, bytes_accessed=bytes_accessed),
    )(xf, w_packed, b_packed)

    if Ppad != P:
        out = out[:, :, :P]
    return out.reshape(B, Cout, K, N)


# ------------------------ deterministic parameter init ------------------------
def init_params(key, in_channel, out_channel, hidden_unit):
    """Conv2d(1x1) weights as [Cout, Cin], biases as [Cout] (PyTorch-style init)."""
    if hidden_unit is None or len(hidden_unit) == 0:
        sizes = [in_channel, out_channel]
    else:
        sizes = [in_channel] + list(hidden_unit) + [out_channel]
    weights, biases = [], []
    keys = jax.random.split(key, 2 * (len(sizes) - 1))
    for i in range(len(sizes) - 1):
        bound = 1.0 / np.sqrt(sizes[i])
        w = jax.random.uniform(keys[2 * i], (sizes[i + 1], sizes[i]),
                               jnp.float32, -bound, bound)
        b = jax.random.uniform(keys[2 * i + 1], (sizes[i + 1],),
                               jnp.float32, -bound, bound)
        weights.append(w)
        biases.append(b)
    return weights, biases


# ------------------------------ pure-JAX reference ----------------------------
def reference_forward(x, weights, biases):
    a = x
    for w, b in zip(weights, biases):
        a = jnp.einsum('oc,bckn->bokn', w, a) + b.reshape(1, -1, 1, 1)
        a = jnp.maximum(a, 0.0)
    return a


# ----------------------------------- main --------------------------------------
if __name__ == "__main__":
    # localized_xyz in PointConv-style usage: [B, 3, nsample, npoint]
    B, in_channel, K, N = 2, 3, 8, 64
    hidden_unit = [8, 8]
    out_channel = 16

    key = jax.random.PRNGKey(0)
    kx, kp = jax.random.split(key)
    x = jax.random.normal(kx, (B, in_channel, K, N), jnp.float32)
    weights, biases = init_params(kp, in_channel, out_channel, hidden_unit)

    out = weightnet_forward(x, weights, biases,
                            max_point_tile=8192,
                            compute_dtype=jnp.bfloat16,
                            out_dtype=jnp.bfloat16)
    out = jax.block_until_ready(out)

    # f32 reference on bf16-roundtripped params/input, quantized to the kernel's
    # output dtype, so only the intentional in-kernel precision choices
    # contribute to the comparison tolerance.
    x_ref = x.astype(jnp.bfloat16).astype(jnp.float32)
    w_ref = [w.astype(jnp.bfloat16).astype(jnp.float32) for w in weights]
    ref = reference_forward(x_ref, w_ref, biases)
    ref = ref.astype(out.dtype).astype(jnp.float32)
    ref = jax.block_until_ready(ref)

    out_f32 = np.asarray(out).astype(np.float32)
    assert out.shape == (B, out_channel, K, N)
    assert np.allclose(out_f32, np.asarray(ref), atol=2e-2, rtol=2e-2), \
        "Pallas kernel output mismatch vs pure-JAX reference"

    print("KERNEL_OK")
</pallas_src>

<mosaic_0001>
module attributes {stable_mosaic.version = 11 : i64} {
  func.func @kernel(%arg0: i32, %arg1: i32, %arg2: memref<1x3x512xf32, #tpu.memory_space<vmem>>, %arg3: memref<32x8xbf16, #tpu.memory_space<vmem>>, %arg4: memref<32x1xf32, #tpu.memory_space<vmem>>, %arg5: memref<1x16x512xbf16, #tpu.memory_space<vmem>>) attributes {dimension_semantics = [#tpu.dimension_semantics<parallel>, #tpu.dimension_semantics<parallel>], iteration_bounds = array<i64: 2, 1>, scalar_prefetch = 0 : i64, scratch_operands = 0 : i64, tpu.core_type = #tpu.core_type<tc>, window_params = [{transform_indices = @transform_0, window_bounds = array<i64: 1, 3, 512>}, {pipeline_mode = #tpu.pipeline_mode<synchronous>, transform_indices = @transform_1, window_bounds = array<i64: 32, 8>}, {pipeline_mode = #tpu.pipeline_mode<synchronous>, transform_indices = @transform_2, window_bounds = array<i64: 32, 1>}, {transform_indices = @transform_3, window_bounds = array<i64: 1, 16, 512>}]} {
    %c0 = arith.constant 0 : index
    %c0_0 = arith.constant 0 : index
    %c0_1 = arith.constant 0 : index
    %0 = vector.load %arg2[%c0, %c0_0, %c0_1] : memref<1x3x512xf32, #tpu.memory_space<vmem>>, vector<1x3x512xf32>
    %1 = vector.shape_cast %0 : vector<1x3x512xf32> to vector<3x512xf32>
    %2 = arith.truncf %1 : vector<3x512xf32> to vector<3x512xbf16>
    %c0_2 = arith.constant 0 : index
    %c0_3 = arith.constant 0 : index
    %3 = vector.load %arg3[%c0_2, %c0_3] : memref<32x8xbf16, #tpu.memory_space<vmem>>, vector<8x3xbf16>
    %c0_4 = arith.constant 0 : index
    %c0_5 = arith.constant 0 : index
    %4 = vector.load %arg4[%c0_4, %c0_5] : memref<32x1xf32, #tpu.memory_space<vmem>>, vector<8x1xf32>
    %cst = arith.constant dense<0.000000e+00> : vector<8x512xf32>
    %5 = tpu.matmul %3, %2, %cst {dimension_numbers = #tpu.dot_dimension_numbers<[1], [0], [0], [1], [0, 0, 1, 1], [], []>} : vector<8x3xbf16>, vector<3x512xbf16>, vector<8x512xf32> -> vector<8x512xf32>
    %6 = vector.broadcast %4 : vector<8x1xf32> to vector<8x512xf32>
    %7 = arith.addf %5, %6 : vector<8x512xf32>
    %cst_6 = arith.constant 0.000000e+00 : f32
    %8 = vector.broadcast %cst_6 : f32 to vector<8x512xf32>
    %9 = arith.maximumf %7, %8 : vector<8x512xf32>
    %10 = arith.truncf %9 : vector<8x512xf32> to vector<8x512xbf16>
    %c8 = arith.constant 8 : index
    %c0_7 = arith.constant 0 : index
    %11 = vector.load %arg3[%c8, %c0_7] : memref<32x8xbf16, #tpu.memory_space<vmem>>, vector<8x8xbf16>
    %c8_8 = arith.constant 8 : index
    %c0_9 = arith.constant 0 : index
    %12 = vector.load %arg4[%c8_8, %c0_9] : memref<32x1xf32, #tpu.memory_space<vmem>>, vector<8x1xf32>
    %cst_10 = arith.constant dense<0.000000e+00> : vector<8x512xf32>
    %13 = tpu.matmul %11, %10, %cst_10 {dimension_numbers = #tpu.dot_dimension_numbers<[1], [0], [0], [1], [0, 0, 1, 1], [], []>} : vector<8x8xbf16>, vector<8x512xbf16>, vector<8x512xf32> -> vector<8x512xf32>
    %14 = vector.broadcast %12 : vector<8x1xf32> to vector<8x512xf32>
    %15 = arith.addf %13, %14 : vector<8x512xf32>
    %cst_11 = arith.constant 0.000000e+00 : f32
    %16 = vector.broadcast %cst_11 : f32 to vector<8x512xf32>
    %17 = arith.maximumf %15, %16 : vector<8x512xf32>
    %18 = arith.truncf %17 : vector<8x512xf32> to vector<8x512xbf16>
    %c16 = arith.constant 16 : index
    %c0_12 = arith.constant 0 : index
    %19 = vector.load %arg3[%c16, %c0_12] : memref<32x8xbf16, #tpu.memory_space<vmem>>, vector<16x8xbf16>
    %c16_13 = arith.constant 16 : index
    %c0_14 = arith.constant 0 : index
    %20 = vector.load %arg4[%c16_13, %c0_14] : memref<32x1xf32, #tpu.memory_space<vmem>>, vector<16x1xf32>
    %cst_15 = arith.constant dense<0.000000e+00> : vector<16x512xf32>
    %21 = tpu.matmul %19, %18, %cst_15 {dimension_numbers = #tpu.dot_dimension_numbers<[1], [0], [0], [1], [0, 0, 1, 1], [], []>} : vector<16x8xbf16>, vector<8x512xbf16>, vector<16x512xf32> -> vector<16x512xf32>
    %22 = vector.broadcast %20 : vector<16x1xf32> to vector<16x512xf32>
    %23 = arith.addf %21, %22 : vector<16x512xf32>
    %cst_16 = arith.constant 0.000000e+00 : f32
    %24 = vector.broadcast %cst_16 : f32 to vector<16x512xf32>
    %25 = arith.maximumf %23, %24 : vector<16x512xf32>
    %26 = arith.truncf %25 : vector<16x512xf32> to vector<16x512xbf16>
    %c0_17 = arith.constant 0 : index
    %c0_18 = arith.constant 0 : index
    %c0_19 = arith.constant 0 : index
    %27 = vector.load %arg5[%c0_17, %c0_18, %c0_19] : memref<1x16x512xbf16, #tpu.memory_space<vmem>>, vector<1x16x512xbf16>
    %28 = vector.shape_cast %27 : vector<1x16x512xbf16> to vector<16x512xbf16>
    %29 = vector.shape_cast %26 : vector<16x512xbf16> to vector<1x16x512xbf16>
    tpu.vector_store %arg5[%c0_17, %c0_18, %c0_19], %29 {strides = array<i32>} : memref<1x16x512xbf16, #tpu.memory_space<vmem>>, vector<1x16x512xbf16>,
    return
  }
  func.func @transform_0(%arg0: i32, %arg1: i32) -> (i32, i32, i32) {
    %c0_i32 = arith.constant 0 : i32
    %c0_i32_0 = arith.constant 0 : i32
    return %arg0, %c0_i32, %arg1 : i32, i32, i32
  }
  func.func @transform_1(%arg0: i32, %arg1: i32) -> (i32, i32) {
    %c0_i32 = arith.constant 0 : i32
    %c0_i32_0 = arith.constant 0 : i32
    %c0_i32_1 = arith.constant 0 : i32
    return %c0_i32, %c0_i32_0 : i32, i32
  }
  func.func @transform_2(%arg0: i32, %arg1: i32) -> (i32, i32) {
    %c0_i32 = arith.constant 0 : i32
    %c0_i32_0 = arith.constant 0 : i32
    %c0_i32_1 = arith.constant 0 : i32
    return %c0_i32, %c0_i32_0 : i32, i32
  }
  func.func @transform_3(%arg0: i32, %arg1: i32) -> (i32, i32, i32) {
    %c0_i32 = arith.constant 0 : i32
    %c0_i32_0 = arith.constant 0 : i32
    return %arg0, %c0_i32, %arg1 : i32, i32, i32
  }
}

</mosaic_0001>

<llo_original>
// kernel: tpu_custom_call.1
$region0: #{tpu_custom_call.1}
  #allocation0 [shape = 'u32[]', space=smem, size = 0x4, offset = 0x4, fixed_abs, tag = 'smem constant byte address 0x4 - core index']
  #allocation1 [shape = 'u32[144,128]{1,0:T(1,128)}', space=vmem, size = 0x12000, scoped, tag = 'internal scratch']
  %s0 = inlined_call_operand.vmem [shape: f32[2,3,512], index: 0, kind: input, shape index: {}]
  %s1 = inlined_call_operand.vmem [shape: bf16[32,8], index: 1, kind: input, shape index: {}]
  %s2 = inlined_call_operand.vmem [shape: f32[32,1], index: 2, kind: input, shape index: {}]
  %s3 = inlined_call_operand.hbm [shape: bf16[2,16,512], index: 3, kind: output, shape index: {}]
  %s4 = sld [smem:[#allocation0]]
  $region45: #{tpu_custom_call.1} parent=0
    _
  %s6 = ssub.s32 1, %s4
  %s7 = scalar_select 0, %s6, %s4
  $region1: #{tpu_custom_call.1} parent=0
    #allocation2 [shape = 'u8[32768]{0}', space=vmem, size = 0x8000, scoped, tag = 'output window, operand 0']
    #allocation3 [shape = 's32[2]{0}', space=sflag, size = 0x8, scoped, tag = 'scoped memory for tpu_custom_call.1']
    %8 = vsyncpa [#allocation3], 0
    %s9 = scalar_lea.sflag [#allocation3], 1
    %10 = vsyncpa %s9, 0
    loop: start=0, step=1, limit=4
    $region2: #{tpu_custom_call.1} parent=1 // loop_pre_header
      _
    $region3: #{tpu_custom_call.1} parent=1 // loop_header
      %s12 = sphi 0, %s16
      %p13 = scmp.ge.s32.totalorder %s12, 4
      %s19 = sphi 0, %s31
      %s20 = sphi 0, %s27
      %s21 = sphi 0, %s19
      %s22 = sphi 0, %s20
      %s23 = sphi 0, %s21
      %s24 = sphi 0, %s22
      %s36 = sphi 0, %s38
      %s39 = sphi 0, %s36
      %s40 = sphi 0, %s39
      %s56 = sphi 0, %s40
      %s60 = sphi 0, %s60
      %s62 = sphi 0, %s60
      %s63 = sphi 0, %s62
      %s77 = sphi 0, %s63
      %s81 = sphi 0, %s81
      %s83 = sphi 0, %s81
      %s84 = sphi 0, %s83
      %s98 = sphi 0, %s84
      %s106 = sphi 0, %s108
      %s109 = sphi 0, %s106
      %s110 = sphi 0, %s109
      %s126 = sphi 0, %s110
    $region4: #{tpu_custom_call.1} parent=1 // loop_header_branch
      %15 = sbr.rel (%p13) target = $region8
    $region5: #{tpu_custom_call.1} parent=1 // loop_body
      %s17 = ssub.s32 %s12, 1
      %s18 = ssub.s32 %s12, 2
      %s25 = sadd.s32 1, %s20
      %p26 = scmp.ge.s32.totalorder %s25, 1
      %s27 = scalar_select %p26, 0, %s25
      %s28 = sadd.s32 1, %s19
      %s29 = scalar_select %p26, %s28, %s19
      %p30 = scmp.ge.s32.totalorder %s29, 2
      %s31 = scalar_select %p30, 0, %s29
      %s32 = ssub.s32 %s19, %s31
      %s33 = ssub.s32 %s20, %s27
      %s34 = sor.u32 %s32, %s33
      %p35 = scmp.eq.s32.totalorder %s34, 0
      %s37 = sadd.s32 %s36, 1
      %s38 = scalar_select %p35, %s36, %s37
      %p41 = pneg %p35
      %p42 = scmp.eq.s32.totalorder %s12, 1
      %p43 = por %p41, %p42
      %p44 = scmp.ne.s32.totalorder %s36, %s39
      %p45 = scmp.eq.s32.totalorder %s12, 0
      %p46 = por %p44, %p45
      %p47 = scmp.ne.s32.totalorder %s36, %s39
      %p48 = scmp.eq.s32.totalorder %s17, 1
      %p49 = por %p47, %p48
      %p50 = scmp.ne.s32.totalorder %s39, %s40
      %p51 = scmp.eq.s32.totalorder %s17, 0
      %p52 = por %p50, %p51
      %p53 = scmp.ne.s32.totalorder %s39, %s40
      %p54 = scmp.eq.s32.totalorder %s18, 1
      %p55 = por %p53, %p54
      %p57 = scmp.ne.s32.totalorder %s40, %s56
      %p58 = scmp.eq.s32.totalorder %s18, 0
      %p59 = por %p57, %p58
      %s61 = sadd.s32 %s60, 1
      %p64 = scmp.eq.s32.totalorder %s12, 1
      %p65 = scmp.ne.s32.totalorder %s60, %s62
      %p66 = scmp.eq.s32.totalorder %s12, 0
      %p67 = por %p65, %p66
      %p68 = scmp.ne.s32.totalorder %s60, %s62
      %p69 = scmp.eq.s32.totalorder %s17, 1
      %p70 = por %p68, %p69
      %p71 = scmp.ne.s32.totalorder %s62, %s63
      %p72 = scmp.eq.s32.totalorder %s17, 0
      %p73 = por %p71, %p72
      %p74 = scmp.ne.s32.totalorder %s62, %s63
      %p75 = scmp.eq.s32.totalorder %s18, 1
      %p76 = por %p74, %p75
      %p78 = scmp.ne.s32.totalorder %s63, %s77
      %p79 = scmp.eq.s32.totalorder %s18, 0
      %p80 = por %p78, %p79
      %s82 = sadd.s32 %s81, 1
      %p85 = scmp.eq.s32.totalorder %s12, 1
      %p86 = scmp.ne.s32.totalorder %s81, %s83
      %p87 = scmp.eq.s32.totalorder %s12, 0
      %p88 = por %p86, %p87
      %p89 = scmp.ne.s32.totalorder %s81, %s83
      %p90 = scmp.eq.s32.totalorder %s17, 1
      %p91 = por %p89, %p90
      %p92 = scmp.ne.s32.totalorder %s83, %s84
      %p93 = scmp.eq.s32.totalorder %s17, 0
      %p94 = por %p92, %p93
      %p95 = scmp.ne.s32.totalorder %s83, %s84
      %p96 = scmp.eq.s32.totalorder %s18, 1
      %p97 = por %p95, %p96
      %p99 = scmp.ne.s32.totalorder %s84, %s98
      %p100 = scmp.eq.s32.totalorder %s18, 0
      %p101 = por %p99, %p100
      %s102 = ssub.s32 %s19, %s31
      %s103 = ssub.s32 %s20, %s27
      %s104 = sor.u32 %s102, %s103
      %p105 = scmp.eq.s32.totalorder %s104, 0
      %s107 = sadd.s32 %s106, 1
      %s108 = scalar_select %p105, %s106, %s107
      %p111 = pneg %p105
      %p112 = scmp.eq.s32.totalorder %s12, 1
      %p113 = por %p111, %p112
      %p114 = scmp.ne.s32.totalorder %s106, %s109
      %p115 = scmp.eq.s32.totalorder %s12, 0
      %p116 = por %p114, %p115
      %p117 = scmp.ne.s32.totalorder %s106, %s109
      %p118 = scmp.eq.s32.totalorder %s17, 1
      %p119 = por %p117, %p118
      %p120 = scmp.ne.s32.totalorder %s109, %s110
      %p121 = scmp.eq.s32.totalorder %s17, 0
      %p122 = por %p120, %p121
      %p123 = scmp.ne.s32.totalorder %s109, %s110
      %p124 = scmp.eq.s32.totalorder %s18, 1
      %p125 = por %p123, %p124
      %p127 = scmp.ne.s32.totalorder %s110, %s126
      %p128 = scmp.eq.s32.totalorder %s18, 0
      %p129 = por %p127, %p128
      %p130 = scmp.le.s32.totalorder 1, %s12
      %p131 = scmp.lt.s32.totalorder %s12, 3
      %p132 = pnand %p130, %p131
      %p133 = pneg %p132
      // Predicated region
      $region9: #{tpu_custom_call.1} parent=5 // pred_check
        _
      $region10: #{tpu_custom_call.1} parent=5 // pred_check_branch
        %135 = sbr.rel (%p132) target = $region12
      $region11: #{tpu_custom_call.1} parent=5 // pred_region
        %s136 = ssub.s32 %s12, 1
        // Predicated region
        $region13: #{tpu_custom_call.1} parent=11 // pred_check
          %p137 = pneg %p73
        $region14: #{tpu_custom_call.1} parent=11 // pred_check_branch
          %139 = sbr.rel (%p137) target = $region16
        $region15: #{tpu_custom_call.1} parent=11 // pred_region
          _
        $region16: #{tpu_custom_call.1} parent=11 // pred_fallthru
          _
        // Predicated region
        $region17: #{tpu_custom_call.1} parent=11 // pred_check
          %p140 = pneg %p94
        $region18: #{tpu_custom_call.1} parent=11 // pred_check_branch
          %142 = sbr.rel (%p140) target = $region20
        $region19: #{tpu_custom_call.1} parent=11 // pred_region
          _
        $region20: #{tpu_custom_call.1} parent=11 // pred_fallthru
          _
      $region12: #{tpu_custom_call.1} parent=5 // pred_fallthru
        _
      %p143 = scmp.lt.s32.totalorder %s12, 2
      // Predicated region
      $region21: #{tpu_custom_call.1} parent=5 // pred_check
        %p144 = pneg %p143
      $region22: #{tpu_custom_call.1} parent=5 // pred_check_branch
        %146 = sbr.rel (%p144) target = $region24
      $region23: #{tpu_custom_call.1} parent=5 // pred_region
        // Predicated region
        $region25: #{tpu_custom_call.1} parent=23 // pred_check
          %p147 = pneg %p46
        $region26: #{tpu_custom_call.1} parent=23 // pred_check_branch
          %149 = sbr.rel (%p147) target = $region28
        $region27: #{tpu_custom_call.1} parent=23 // pred_region
          %s150 = smul.u32 4, %s20
          %p151 = scmp.lt.s32.totalorder %s19, 1
          %s152 = scalar_select %p151, %s19, 1
          %p153 = scmp.lt.s32.totalorder %s150, 3
          %s154 = scalar_select %p153, %s150, 3
          %s155 = smul.addr %s152, 4
          %s156 = sadd.s32 %s154, %s155
          %s157 = smul.addr %s156, 4
          %s158 = scalar_lea.vmem %s0, %s157
          %s159 = smul.u32 4, %s20
        $region28: #{tpu_custom_call.1} parent=23 // pred_fallthru
          _
      $region24: #{tpu_custom_call.1} parent=5 // pred_fallthru
        _
      %p160 = scmp.le.s32.totalorder 1, %s12
      %p161 = scmp.lt.s32.totalorder %s12, 3
      %p162 = pnand %p160, %p161
      %p163 = pneg %p162
      // Predicated region
      $region29: #{tpu_custom_call.1} parent=5 // pred_check
        _
      $region30: #{tpu_custom_call.1} parent=5 // pred_check_branch
        %165 = sbr.rel (%p162) target = $region32
      $region31: #{tpu_custom_call.1} parent=5 // pred_region
        %s166 = ssub.s32 %s12, 1
        %s167 = smul.u32 4, %s22
        %p168 = scmp.lt.s32.totalorder %s21, 1
        %s169 = scalar_select %p168, %s21, 1
        %p170 = scmp.lt.s32.totalorder %s167, 3
        %s171 = scalar_select %p170, %s167, 3
        %s172 = smul.addr %s169, 4
        %s173 = sadd.s32 %s171, %s172
        %s174 = smul.addr %s173, 4
        %s175 = scalar_lea.vmem %s0, %s174
        %p176 = pneg %p52
        %p177 = pneg %p49
        %p178 = pneg %p73
        %p179 = pneg %p70
        %p180 = pneg %p94
        %p181 = pneg %p91
        %p182 = pneg %p122
        %p183 = pneg %p119
        %s184 = sand.u32 %s109, 1
        %s185 = scalar_lea.sflag [#allocation3], %s184
        %s186 = sand.u32 %s109, 1
        %s187 = smul.addr %s186, 32
        %s188 = scalar_lea.vmem [#allocation2], %s187
        %s189 = smul.u32 4, %s22
        %p190 = scmp.lt.s32.totalorder %s21, 1
        %s191 = scalar_select %p190, %s21, 1
        %p192 = scmp.lt.s32.totalorder %s189, 3
        %s193 = scalar_select %p192, %s189, 3
        %s194 = smul.addr %s191, 4
        %s195 = sadd.s32 %s193, %s194
        %s196 = smul.addr %s195, 4
        %s197 = scalar_lea.vmem %s0, %s196
        %s198 = smul.u32 4, %s22
        %s199 = smul.u32 4, %s22
        %v201 = vld [vmem:[%s197] sm:$0x77]
        %v202 = vld [vmem:[%s197 + $0x8] sm:$0x77]
        %v205 = vcombine.high %v201, %v201
        %v206 = vcombine.high %v202, %v202
        %v209 = vpack.c.bf16 %v201, %v201
        %v210 = vpack.c.bf16 %v205, %v205
        %v211 = vpack.c.bf16 %v202, %v202
        %v212 = vpack.c.bf16 %v206, %v206
        %v213 = vld [vmem:[%s1] sm:$0xf]
        %v214 = vld [vmem:[%s2] sm:$0xff]
        %216 = vset.pattern.permute.xlu0 0
        %217 = vperm.xlu0 %216, %v214
        %v218 = vpop.permute.xlu0 %217
        %vm220 = vcmask 23552
        %v222 = vsel %vm220, %v213, 0
        %vm224 = vcmask 1040384
        %vm225 = vcmask 1041408
        %v226 = vsel %vm224, 4294967295, 65535
        %v227 = vsel %vm225, %v226, 0
        %v229 = vand.u32 %v209, %v227
        %v232 = vand.u32 %v210, %v227
        %v235 = vand.u32 %v211, %v227
        %v238 = vand.u32 %v212, %v227
        %240 = vmatprep.subr.bf16.mxu0 %v232
        %241 = vmatpush1.bf16.msra.mxu0 %v229
        %242 = vmatprep.subr.bf16.mxu0 0
        %243 = vmatpush1.bf16.msra.mxu0 0
        %244 = vmatprep.subr.bf16.mxu0 0
        %245 = vmatpush1.bf16.msra.mxu0 0
        %246 = vmatprep.subr.bf16.mxu0 0
        %247 = vmatpush1.bf16.msra.mxu0 0
        %248 = vmatprep.subr.bf16.mxu0 0
        %249 = vmatpush1.bf16.msra.mxu0 0
        %250 = vmatprep.subr.bf16.mxu0 0
        %251 = vmatpush1.bf16.msra.mxu0 0
        %252 = vmatprep.subr.bf16.mxu0 0
        %253 = vmatpush1.bf16.msra.mxu0 0
        %254 = vmatprep.subr.bf16.mxu0 0
        %255 = vmatpush1.bf16.msra.mxu0 0
        %256 = vmatprep.subr.bf16.mxu0 0
        %257 = vmatpush1.bf16.msra.mxu0 0
        %258 = vmatprep.subr.bf16.mxu0 0
        %259 = vmatpush1.bf16.msra.mxu0 0
        %260 = vmatprep.subr.bf16.mxu0 0
        %261 = vmatpush1.bf16.msra.mxu0 0
        %262 = vmatprep.subr.bf16.mxu0 0
        %263 = vmatpush1.bf16.msra.mxu0 0
        %264 = vmatprep.subr.bf16.mxu0 0
        %265 = vmatpush1.bf16.msra.mxu0 0
        %266 = vmatprep.subr.bf16.mxu0 0
        %267 = vmatpush1.bf16.msra.mxu0 0
        %268 = vmatprep.subr.bf16.mxu0 0
        %269 = vmatpush1.bf16.msra.mxu0 0
        %270 = vmatprep.subr.bf16.mxu0 0
        %271 = vmatpush1.bf16.msra.mxu0 0
        %272 = vmatprep.mubr.bf16.mxu0 0
        %273 = vmatmul.mubr.bf16.gmra.mrb[0].mxu0 %v222
        %v274 = vpop.f32.mrb[0].mxu0
        %v275 = vadd.f32 %v218, %v274
        %v276 = vpop.f32.mrb[0].mxu0
        %v277 = vadd.f32 %v218, %v276
        %v278 = vpop.f32.mrb[0].mxu0
        %v279 = vpop.f32.mrb[0].mxu0
        %280 = vdwg.mxu0
        %281 = vmatprep.subr.bf16.mxu0 %v238
        %282 = vmatpush1.bf16.msra.mxu0 %v235
        %283 = vmatprep.subr.bf16.mxu0 0
        %284 = vmatpush1.bf16.msra.mxu0 0
        %285 = vmatprep.subr.bf16.mxu0 0
        %286 = vmatpush1.bf16.msra.mxu0 0
        %287 = vmatprep.subr.bf16.mxu0 0
        %288 = vmatpush1.bf16.msra.mxu0 0
        %289 = vmatprep.subr.bf16.mxu0 0
        %290 = vmatpush1.bf16.msra.mxu0 0
        %291 = vmatprep.subr.bf16.mxu0 0
        %292 = vmatpush1.bf16.msra.mxu0 0
        %293 = vmatprep.subr.bf16.mxu0 0
        %294 = vmatpush1.bf16.msra.mxu0 0
        %295 = vmatprep.subr.bf16.mxu0 0
        %296 = vmatpush1.bf16.msra.mxu0 0
        %297 = vmatprep.subr.bf16.mxu0 0
        %298 = vmatpush1.bf16.msra.mxu0 0
        %299 = vmatprep.subr.bf16.mxu0 0
        %300 = vmatpush1.bf16.msra.mxu0 0
        %301 = vmatprep.subr.bf16.mxu0 0
        %302 = vmatpush1.bf16.msra.mxu0 0
        %303 = vmatprep.subr.bf16.mxu0 0
        %304 = vmatpush1.bf16.msra.mxu0 0
        %305 = vmatprep.subr.bf16.mxu0 0
        %306 = vmatpush1.bf16.msra.mxu0 0
        %307 = vmatprep.subr.bf16.mxu0 0
        %308 = vmatpush1.bf16.msra.mxu0 0
        %309 = vmatprep.subr.bf16.mxu0 0
        %310 = vmatpush1.bf16.msra.mxu0 0
        %311 = vmatprep.subr.bf16.mxu0 0
        %312 = vmatpush1.bf16.msra.mxu0 0
        %313 = vmatprep.mubr.bf16.mxu0 0
        %314 = vmatmul.mubr.bf16.gmra.mrb[0].mxu0 %v222
        %v315 = vpop.f32.mrb[0].mxu0
        %v316 = vadd.f32 %v218, %v315
        %v317 = vpop.f32.mrb[0].mxu0
        %v318 = vadd.f32 %v218, %v317
        %v319 = vpop.f32.mrb[0].mxu0
        %v320 = vpop.f32.mrb[0].mxu0
        %321 = vdwg.mxu0
        %v322 = vmax.f32 %v275, 0.0
        %v323 = vmax.f32 %v277, 0.0
        %v324 = vmax.f32 %v316, 0.0
        %v325 = vmax.f32 %v318, 0.0
        %v326 = vpack.c.bf16 %v322, %v322
        %v327 = vpack.c.bf16 %v323, %v323
        %v328 = vpack.c.bf16 %v324, %v324
        %v329 = vpack.c.bf16 %v325, %v325
        %v330 = vld [vmem:[%s1 + $0x4] sm:$0xf]
        %v331 = vld [vmem:[%s2 + $0x8] sm:$0xff]
        %333 = vset.pattern.permute.xlu0 0
        %334 = vperm.xlu0 %333, %v331
        %v335 = vpop.permute.xlu0 %334
        %vm337 = vcmask 64512
        %v339 = vsel %vm337, %v330, 0
        %vm341 = vcmask 1043456
        %v343 = vsel %vm341, %v326, 0
        %v346 = vsel %vm341, %v327, 0
        %v349 = vsel %vm341, %v328, 0
        %v352 = vsel %vm341, %v329, 0
        %354 = vmatprep.subr.bf16.mxu0 %v346
        %355 = vmatpush1.bf16.msra.mxu0 %v343
        %356 = vmatprep.subr.bf16.mxu0 0
        %357 = vmatpush1.bf16.msra.mxu0 0
        %358 = vmatprep.subr.bf16.mxu0 0
        %359 = vmatpush1.bf16.msra.mxu0 0
        %360 = vmatprep.subr.bf16.mxu0 0
        %361 = vmatpush1.bf16.msra.mxu0 0
        %362 = vmatprep.subr.bf16.mxu0 0
        %363 = vmatpush1.bf16.msra.mxu0 0
        %364 = vmatprep.subr.bf16.mxu0 0
        %365 = vmatpush1.bf16.msra.mxu0 0
        %366 = vmatprep.subr.bf16.mxu0 0
        %367 = vmatpush1.bf16.msra.mxu0 0
        %368 = vmatprep.subr.bf16.mxu0 0
        %369 = vmatpush1.bf16.msra.mxu0 0
        %370 = vmatprep.subr.bf16.mxu0 0
        %371 = vmatpush1.bf16.msra.mxu0 0
        %372 = vmatprep.subr.bf16.mxu0 0
        %373 = vmatpush1.bf16.msra.mxu0 0
        %374 = vmatprep.subr.bf16.mxu0 0
        %375 = vmatpush1.bf16.msra.mxu0 0
        %376 = vmatprep.subr.bf16.mxu0 0
        %377 = vmatpush1.bf16.msra.mxu0 0
        %378 = vmatprep.subr.bf16.mxu0 0
        %379 = vmatpush1.bf16.msra.mxu0 0
        %380 = vmatprep.subr.bf16.mxu0 0
        %381 = vmatpush1.bf16.msra.mxu0 0
        %382 = vmatprep.subr.bf16.mxu0 0
        %383 = vmatpush1.bf16.msra.mxu0 0
        %384 = vmatprep.subr.bf16.mxu0 0
        %385 = vmatpush1.bf16.msra.mxu0 0
        %386 = vmatprep.mubr.bf16.mxu0 0
        %387 = vmatmul.mubr.bf16.gmra.mrb[0].mxu0 %v339
        %v388 = vpop.f32.mrb[0].mxu0
        %v389 = vadd.f32 %v335, %v388
        %v390 = vpop.f32.mrb[0].mxu0
        %v391 = vadd.f32 %v335, %v390
        %v392 = vpop.f32.mrb[0].mxu0
        %v393 = vpop.f32.mrb[0].mxu0
        %394 = vdwg.mxu0
        %395 = vmatprep.subr.bf16.mxu0 %v352
        %396 = vmatpush1.bf16.msra.mxu0 %v349
        %397 = vmatprep.subr.bf16.mxu0 0
        %398 = vmatpush1.bf16.msra.mxu0 0
        %399 = vmatprep.subr.bf16.mxu0 0
        %400 = vmatpush1.bf16.msra.mxu0 0
        %401 = vmatprep.subr.bf16.mxu0 0
        %402 = vmatpush1.bf16.msra.mxu0 0
        %403 = vmatprep.subr.bf16.mxu0 0
        %404 = vmatpush1.bf16.msra.mxu0 0
        %405 = vmatprep.subr.bf16.mxu0 0
        %406 = vmatpush1.bf16.msra.mxu0 0
        %407 = vmatprep.subr.bf16.mxu0 0
        %408 = vmatpush1.bf16.msra.mxu0 0
        %409 = vmatprep.subr.bf16.mxu0 0
        %410 = vmatpush1.bf16.msra.mxu0 0
        %411 = vmatprep.subr.bf16.mxu0 0
        %412 = vmatpush1.bf16.msra.mxu0 0
        %413 = vmatprep.subr.bf16.mxu0 0
        %414 = vmatpush1.bf16.msra.mxu0 0
        %415 = vmatprep.subr.bf16.mxu0 0
        %416 = vmatpush1.bf16.msra.mxu0 0
        %417 = vmatprep.subr.bf16.mxu0 0
        %418 = vmatpush1.bf16.msra.mxu0 0
        %419 = vmatprep.subr.bf16.mxu0 0
        %420 = vmatpush1.bf16.msra.mxu0 0
        %421 = vmatprep.subr.bf16.mxu0 0
        %422 = vmatpush1.bf16.msra.mxu0 0
        %423 = vmatprep.subr.bf16.mxu0 0
        %424 = vmatpush1.bf16.msra.mxu0 0
        %425 = vmatprep.subr.bf16.mxu0 0
        %426 = vmatpush1.bf16.msra.mxu0 0
        %427 = vmatprep.mubr.bf16.mxu0 0
        %428 = vmatmul.mubr.bf16.gmra.mrb[0].mxu0 %v339
        %v429 = vpop.f32.mrb[0].mxu0
        %v430 = vadd.f32 %v335, %v429
        %v431 = vpop.f32.mrb[0].mxu0
        %v432 = vadd.f32 %v335, %v431
        %v433 = vpop.f32.mrb[0].mxu0
        %v434 = vpop.f32.mrb[0].mxu0
        %435 = vdwg.mxu0
        %v436 = vmax.f32 %v389, 0.0
        %v437 = vmax.f32 %v391, 0.0
        %v438 = vmax.f32 %v430, 0.0
        %v439 = vmax.f32 %v432, 0.0
        %v440 = vpack.c.bf16 %v436, %v436
        %v441 = vpack.c.bf16 %v437, %v437
        %v442 = vpack.c.bf16 %v438, %v438
        %v443 = vpack.c.bf16 %v439, %v439
        %v444 = vld [vmem:[%s1 + $0x8] sm:$0xf]
        %v445 = vld [vmem:[%s1 + $0xc] sm:$0xf]
        %v446 = vld [vmem:[%s2 + $0x10] sm:$0xff]
        %v447 = vld [vmem:[%s2 + $0x18] sm:$0xff]
        %449 = vset.pattern.permute.xlu0 0
        %450 = vperm.xlu0 %449, %v446
        %v451 = vpop.permute.xlu0 %450
        %454 = vset.pattern.permute.xlu0 0
        %455 = vperm.xlu0 %454, %v447
        %v456 = vpop.permute.xlu0 %455
        %v460 = vunpack.c.l.b16 %v444
        %v461 = vunpack.c.l.b16 %v445
        %v462 = vpack.c.b16 %v461, %v460
        %v464 = vsel %vm337, %v462, 0
        %v467 = vsel %vm341, %v440, 0
        %v470 = vsel %vm341, %v441, 0
        %v473 = vsel %vm341, %v442, 0
        %v476 = vsel %vm341, %v443, 0
        %478 = vmatprep.subr.bf16.mxu0 %v470
        %479 = vmatpush1.bf16.msra.mxu0 %v467
        %480 = vmatprep.subr.bf16.mxu0 0
        %481 = vmatpush1.bf16.msra.mxu0 0
        %482 = vmatprep.subr.bf16.mxu0 0
        %483 = vmatpush1.bf16.msra.mxu0 0
        %484 = vmatprep.subr.bf16.mxu0 0
        %485 = vmatpush1.bf16.msra.mxu0 0
        %486 = vmatprep.subr.bf16.mxu0 0
        %487 = vmatpush1.bf16.msra.mxu0 0
        %488 = vmatprep.subr.bf16.mxu0 0
        %489 = vmatpush1.bf16.msra.mxu0 0
        %490 = vmatprep.subr.bf16.mxu0 0
        %491 = vmatpush1.bf16.msra.mxu0 0
        %492 = vmatprep.subr.bf16.mxu0 0
        %493 = vmatpush1.bf16.msra.mxu0 0
        %494 = vmatprep.subr.bf16.mxu0 0
        %495 = vmatpush1.bf16.msra.mxu0 0
        %496 = vmatprep.subr.bf16.mxu0 0
        %497 = vmatpush1.bf16.msra.mxu0 0
        %498 = vmatprep.subr.bf16.mxu0 0
        %499 = vmatpush1.bf16.msra.mxu0 0
        %500 = vmatprep.subr.bf16.mxu0 0
        %501 = vmatpush1.bf16.msra.mxu0 0
        %502 = vmatprep.subr.bf16.mxu0 0
        %503 = vmatpush1.bf16.msra.mxu0 0
        %504 = vmatprep.subr.bf16.mxu0 0
        %505 = vmatpush1.bf16.msra.mxu0 0
        %506 = vmatprep.subr.bf16.mxu0 0
        %507 = vmatpush1.bf16.msra.mxu0 0
        %508 = vmatprep.subr.bf16.mxu0 0
        %509 = vmatpush1.bf16.msra.mxu0 0
        %510 = vmatprep.mubr.bf16.mxu0 0
        %511 = vmatmul.mubr.bf16.gmra.mrb[0].mxu0 %v464
        %v512 = vpop.f32.mrb[0].mxu0
        %v513 = vadd.f32 %v451, %v512
        %v514 = vpop.f32.mrb[0].mxu0
        %v515 = vadd.f32 %v451, %v514
        %v516 = vpop.f32.mrb[0].mxu0
        %v517 = vadd.f32 %v456, %v516
        %v518 = vpop.f32.mrb[0].mxu0
        %v519 = vadd.f32 %v456, %v518
        %520 = vdwg.mxu0
        %521 = vmatprep.subr.bf16.mxu0 %v476
        %522 = vmatpush1.bf16.msra.mxu0 %v473
        %523 = vmatprep.subr.bf16.mxu0 0
        %524 = vmatpush1.bf16.msra.mxu0 0
        %525 = vmatprep.subr.bf16.mxu0 0
        %526 = vmatpush1.bf16.msra.mxu0 0
        %527 = vmatprep.subr.bf16.mxu0 0
        %528 = vmatpush1.bf16.msra.mxu0 0
        %529 = vmatprep.subr.bf16.mxu0 0
        %530 = vmatpush1.bf16.msra.mxu0 0
        %531 = vmatprep.subr.bf16.mxu0 0
        %532 = vmatpush1.bf16.msra.mxu0 0
        %533 = vmatprep.subr.bf16.mxu0 0
        %534 = vmatpush1.bf16.msra.mxu0 0
        %535 = vmatprep.subr.bf16.mxu0 0
        %536 = vmatpush1.bf16.msra.mxu0 0
        %537 = vmatprep.subr.bf16.mxu0 0
        %538 = vmatpush1.bf16.msra.mxu0 0
        %539 = vmatprep.subr.bf16.mxu0 0
        %540 = vmatpush1.bf16.msra.mxu0 0
        %541 = vmatprep.subr.bf16.mxu0 0
        %542 = vmatpush1.bf16.msra.mxu0 0
        %543 = vmatprep.subr.bf16.mxu0 0
        %544 = vmatpush1.bf16.msra.mxu0 0
        %545 = vmatprep.subr.bf16.mxu0 0
        %546 = vmatpush1.bf16.msra.mxu0 0
        %547 = vmatprep.subr.bf16.mxu0 0
        %548 = vmatpush1.bf16.msra.mxu0 0
        %549 = vmatprep.subr.bf16.mxu0 0
        %550 = vmatpush1.bf16.msra.mxu0 0
        %551 = vmatprep.subr.bf16.mxu0 0
        %552 = vmatpush1.bf16.msra.mxu0 0
        %553 = vmatprep.mubr.bf16.mxu0 0
        %554 = vmatmul.mubr.bf16.gmra.mrb[0].mxu0 %v464
        %v555 = vpop.f32.mrb[0].mxu0
        %v556 = vadd.f32 %v451, %v555
        %v557 = vpop.f32.mrb[0].mxu0
        %v558 = vadd.f32 %v451, %v557
        %v559 = vpop.f32.mrb[0].mxu0
        %v560 = vadd.f32 %v456, %v559
        %v561 = vpop.f32.mrb[0].mxu0
        %v562 = vadd.f32 %v456, %v561
        %563 = vdwg.mxu0
        %v564 = vmax.f32 %v513, 0.0
        %v565 = vmax.f32 %v515, 0.0
        %v566 = vmax.f32 %v556, 0.0
        %v567 = vmax.f32 %v558, 0.0
        %v568 = vmax.f32 %v517, 0.0
        %v569 = vmax.f32 %v519, 0.0
        %v570 = vmax.f32 %v560, 0.0
        %v571 = vmax.f32 %v562, 0.0
        %v572 = vpack.c.bf16 %v568, %v564
        %v573 = vpack.c.bf16 %v569, %v565
        %v574 = vpack.c.bf16 %v570, %v566
        %v575 = vpack.c.bf16 %v571, %v567
        %v580 = vunpack.c.l.b16 %v572
        %v581 = vunpack.c.l.b16 %v573
        %v582 = vunpack.c.l.b16 %v574
        %v583 = vunpack.c.l.b16 %v575
        %v584 = vunpack.c.h.b16 %v572
        %v585 = vunpack.c.h.b16 %v573
        %v586 = vunpack.c.h.b16 %v574
        %v587 = vunpack.c.h.b16 %v575
        %v588 = vpack.c.b16 %v581, %v580
        %v589 = vpack.c.b16 %v583, %v582
        %v590 = vpack.c.b16 %v585, %v584
        %v591 = vpack.c.b16 %v587, %v586
        %596 = vst [vmem:[%s188] sm:$0xff] %v588
        %597 = vst [vmem:[%s188 + $0x8] sm:$0xff] %v589
        %598 = vst [vmem:[%s188 + $0x10] sm:$0xff] %v590
        %599 = vst [vmem:[%s188 + $0x18] sm:$0xff] %v591
        %s600 = sand.u32 %s109, 1
        %s601 = scalar_lea.sflag [#allocation3], %s600
        %s602 = sand.u32 %s109, 1
        %s603 = smul.addr %s602, 32
        %s604 = scalar_lea.vmem [#allocation2], %s603
        // Predicated region
        $region33: #{tpu_custom_call.1} parent=31 // pred_check
          %p605 = pneg %p119
        $region34: #{tpu_custom_call.1} parent=31 // pred_check_branch
          %607 = sbr.rel (%p605) target = $region36
        $region35: #{tpu_custom_call.1} parent=31 // pred_region
          %s608 = smul.u32 4, %s22
          %s610 = ssub.s32 512, 512
          %611 = vsyncadd %s601, %s610
          %s612 = smul.addr %s21, 8
          %s613 = sadd.s32 %s608, %s612
          %s614 = smul.addr %s613, 64
          %s615 = scalar_lea.hbm %s3, %s614
          %s616 = sshll.u32 %s604, 4
          %s617 = int_to_ptr.vmem [resolvable:$true] %s616
          %622 = dma.vmem_to_hbm [thread:$0]  %s617, 512, %s615, %s601, 256, 256, 16
        $region36: #{tpu_custom_call.1} parent=31 // pred_fallthru
          _
      $region32: #{tpu_custom_call.1} parent=5 // pred_fallthru
        _
      %p623 = scmp.le.s32.totalorder 2, %s12
      // Predicated region
      $region37: #{tpu_custom_call.1} parent=5 // pred_check
        %p624 = pneg %p623
      $region38: #{tpu_custom_call.1} parent=5 // pred_check_branch
        %626 = sbr.rel (%p624) target = $region40
      $region39: #{tpu_custom_call.1} parent=5 // pred_region
        %s627 = ssub.s32 %s12, 2
        // Predicated region
        $region41: #{tpu_custom_call.1} parent=39 // pred_check
          %p628 = pneg %p125
        $region42: #{tpu_custom_call.1} parent=39 // pred_check_branch
          %630 = sbr.rel (%p628) target = $region44
        $region43: #{tpu_custom_call.1} parent=39 // pred_region
          %s631 = sand.u32 %s110, 1
          %s632 = scalar_lea.sflag [#allocation3], %s631
          %s633 = sand.u32 %s110, 1
          %s634 = smul.addr %s633, 32
          %s635 = scalar_lea.vmem [#allocation2], %s634
          %636 = dma.done %s632, 512
        $region44: #{tpu_custom_call.1} parent=39 // pred_fallthru
          _
      $region40: #{tpu_custom_call.1} parent=5 // pred_fallthru
        _
    $region6: #{tpu_custom_call.1} parent=1 // loop_footer
      %s16 = sadd.s32 1, %s12
    $region7: #{tpu_custom_call.1} parent=1 // loop_footer_branch
      %11 = sbr.rel target = $region3
    $region8: #{tpu_custom_call.1} parent=1 // loop_exit
      _
    %637 = vsyncpa [#allocation3], 1
    %s638 = scalar_lea.sflag [#allocation3], 1
    %639 = vsyncpa %s638, 1

</llo_original>
